<compile_context>
chip_gen: v7x
topology: tpu7x:2x2x1
jax: 0.10.0
libtpu: 0.0.40
codegen_flags: <defaults>
</compile_context>

<pallas_src>
import math
import functools

import jax
import jax.numpy as jnp
from jax.experimental import pallas as pl
from jax.experimental.pallas import tpu as pltpu


def _bessel_kernel(x_ref, w_ref, o_ref, *, inv_rcut, prefactor):
    # x_ref: (1, tile_n) input dtype; w_ref: (num_basis, 1) f32;
    # o_ref: (num_basis, tile_n) output dtype.
    x = x_ref[...].astype(jnp.float32)        # (1, T) upcast in-register
    w = w_ref[...]                            # (NB, 1)
    scale = prefactor / x                     # (1, T): one exact divide per x
    arg = (x * inv_rcut) * w                  # (NB, T) sublane/lane broadcast
    o_ref[...] = (jnp.sin(arg) * scale).astype(o_ref.dtype)


def bessel_basis(x, bessel_weights, rcut=10.0, max_tile_n=64 * 1024):
    """Evaluate the Bessel basis. Returns array of shape (*x.shape, num_basis)."""
    orig_shape = x.shape
    num_basis = int(bessel_weights.shape[0])
    prefactor = 2.0 / float(rcut)
    inv_rcut = 1.0 / float(rcut)

    if jnp.issubdtype(x.dtype, jnp.floating):
        out_dtype = x.dtype
    else:
        out_dtype = jnp.float32
        x = x.astype(jnp.float32)

    M = math.prod(orig_shape) if orig_shape else 1
    x2d = x.reshape(1, M)                                    # free reshape
    w2d = bessel_weights.astype(jnp.float32).reshape(num_basis, 1)

    # Tile sizing: big lane-dense blocks (multiple of 128), capped so that the
    # f32 out block stays ~2 MiB (fits every generation's default scoped VMEM
    # double-buffered), and aim for >= ~8 grid steps so both v7x TCs get work.
    target = pl.cdiv(M, 8)
    tile_n = max(128, min(max_tile_n, pl.cdiv(target, 128) * 128))
    grid = (pl.cdiv(M, tile_n),)

    kernel = functools.partial(_bessel_kernel, inv_rcut=inv_rcut,
                               prefactor=prefactor)

    out_bm = pl.pallas_call(
        kernel,
        out_shape=jax.ShapeDtypeStruct((num_basis, M), out_dtype),
        grid_spec=pltpu.PrefetchScalarGridSpec(
            num_scalar_prefetch=0,
            grid=grid,
            in_specs=[
                pl.BlockSpec((1, tile_n), lambda i: (0, i)),        # x row
                pl.BlockSpec((num_basis, 1), lambda i: (0, 0)),     # weights
            ],
            out_specs=pl.BlockSpec((num_basis, tile_n), lambda i: (0, i)),
        ),
        compiler_params=pltpu.CompilerParams(
            dimension_semantics=("parallel",)),
    )(x2d, w2d)

    # Basis-major -> (..., num_basis). Pure layout plumbing; if the downstream
    # consumer contracts over the basis dim, keep basis-major and fuse instead.
    out = out_bm.T.reshape(*orig_shape, num_basis)
    return out


if __name__ == "__main__":
    rcut = 10.0
    num_basis = 8

    # Deterministic parameter init, matching the PyTorch __init__:
    # linspace(1, num_basis, num_basis) * pi
    bessel_weights = jnp.linspace(1.0, float(num_basis), num_basis) * math.pi

    # Small deterministic input of distances in (0, rcut).
    key = jax.random.PRNGKey(0)
    x = jax.random.uniform(key, (2, 4, 16, 16), dtype=jnp.float32,
                           minval=0.1, maxval=rcut)

    out = bessel_basis(x, bessel_weights, rcut=rcut)
    out = jax.block_until_ready(out)

    # Pure-JAX reference check (same math as PyTorch forward).
    ref = (2.0 / rcut) * jnp.sin(bessel_weights * x[..., None] / rcut) / x[..., None]
    assert out.shape == (2, 4, 16, 16, num_basis)
    assert out.dtype == x.dtype
    assert jnp.allclose(out, ref, atol=1e-5, rtol=1e-5)

    print("KERNEL_OK")
</pallas_src>

<mosaic_0001>
module attributes {stable_mosaic.version = 11 : i64} {
  func.func @_bessel_kernel(%arg0: i32, %arg1: memref<1x256xf32, #tpu.memory_space<vmem>>, %arg2: memref<8x1xf32, #tpu.memory_space<vmem>>, %arg3: memref<8x256xf32, #tpu.memory_space<vmem>>) attributes {dimension_semantics = [#tpu.dimension_semantics<parallel>], iteration_bounds = array<i64: 8>, scalar_prefetch = 0 : i64, scratch_operands = 0 : i64, tpu.core_type = #tpu.core_type<tc>, window_params = [{transform_indices = @transform_0, window_bounds = array<i64: 1, 256>}, {pipeline_mode = #tpu.pipeline_mode<synchronous>, transform_indices = @transform_1, window_bounds = array<i64: 8, 1>}, {transform_indices = @transform_2, window_bounds = array<i64: 8, 256>}]} {
    %c0 = arith.constant 0 : index
    %c0_0 = arith.constant 0 : index
    %0 = vector.load %arg1[%c0, %c0_0] : memref<1x256xf32, #tpu.memory_space<vmem>>, vector<1x256xf32>
    %c0_1 = arith.constant 0 : index
    %c0_2 = arith.constant 0 : index
    %1 = vector.load %arg2[%c0_1, %c0_2] : memref<8x1xf32, #tpu.memory_space<vmem>>, vector<8x1xf32>
    %cst = arith.constant 2.000000e-01 : f32
    %2 = vector.broadcast %cst : f32 to vector<1x256xf32>
    %3 = arith.divf %2, %0 : vector<1x256xf32>
    %cst_3 = arith.constant 1.000000e-01 : f32
    %4 = vector.broadcast %cst_3 : f32 to vector<1x256xf32>
    %5 = arith.mulf %0, %4 : vector<1x256xf32>
    %6 = vector.broadcast %5 : vector<1x256xf32> to vector<8x256xf32>
    %7 = vector.broadcast %1 : vector<8x1xf32> to vector<8x256xf32>
    %8 = arith.mulf %6, %7 : vector<8x256xf32>
    %9 = math.sin %8 : vector<8x256xf32>
    %10 = vector.broadcast %3 : vector<1x256xf32> to vector<8x256xf32>
    %11 = arith.mulf %9, %10 : vector<8x256xf32>
    %c0_4 = arith.constant 0 : index
    %c0_5 = arith.constant 0 : index
    %12 = vector.load %arg3[%c0_4, %c0_5] : memref<8x256xf32, #tpu.memory_space<vmem>>, vector<8x256xf32>
    tpu.vector_store %arg3[%c0_4, %c0_5], %11 {strides = array<i32>} : memref<8x256xf32, #tpu.memory_space<vmem>>, vector<8x256xf32>,
    return
  }
  func.func @transform_0(%arg0: i32) -> (i32, i32) {
    %c0_i32 = arith.constant 0 : i32
    %c0_i32_0 = arith.constant 0 : i32
    return %c0_i32, %arg0 : i32, i32
  }
  func.func @transform_1(%arg0: i32) -> (i32, i32) {
    %c0_i32 = arith.constant 0 : i32
    %c0_i32_0 = arith.constant 0 : i32
    %c0_i32_1 = arith.constant 0 : i32
    return %c0_i32, %c0_i32_0 : i32, i32
  }
  func.func @transform_2(%arg0: i32) -> (i32, i32) {
    %c0_i32 = arith.constant 0 : i32
    %c0_i32_0 = arith.constant 0 : i32
    return %c0_i32, %arg0 : i32, i32
  }
}

</mosaic_0001>

<llo_original>
// kernel: tpu_custom_call.1
$region0: #{tpu_custom_call.1}
  #allocation0 [shape = 'u32[]', space=smem, size = 0x4, offset = 0x4, fixed_abs, tag = 'smem constant byte address 0x4 - core index']
  #allocation1 [shape = 'u32[144,128]{1,0:T(1,128)}', space=vmem, size = 0x12000, scoped, tag = 'internal scratch']
  %s0 = inlined_call_operand.hbm [shape: f32[1,2048], index: 0, kind: input, shape index: {}]
  %s1 = inlined_call_operand.vmem [shape: f32[8,1], index: 1, kind: input, shape index: {}]
  %s2 = inlined_call_operand.hbm [shape: f32[8,2048], index: 2, kind: output, shape index: {}]
  %s3 = sld [smem:[#allocation0]]
  $region45: #{tpu_custom_call.1} parent=0
    _
  %s5 = ssub.s32 1, %s3
  %s6 = scalar_select 0, %s5, %s3
  $region1: #{tpu_custom_call.1} parent=0
    #allocation2 [shape = 'u8[2048]{0}', space=vmem, size = 0x800, scoped, tag = 'input window, operand 0']
    #allocation3 [shape = 's32[2]{0}', space=sflag, size = 0x8, scoped, tag = 'scoped memory for tpu_custom_call.1']
    #allocation4 [shape = 's32[2]{0}', space=sflag, size = 0x8, scoped, tag = 'scoped memory for tpu_custom_call.1']
    #allocation5 [shape = 'u8[16384]{0}', space=vmem, size = 0x4000, scoped, tag = 'output window, operand 0']
    %7 = vsyncpa [#allocation3], 0
    %s8 = scalar_lea.sflag [#allocation3], 1
    %9 = vsyncpa %s8, 0
    %10 = vsyncpa [#allocation4], 0
    %s11 = scalar_lea.sflag [#allocation4], 1
    %12 = vsyncpa %s11, 0
    loop: start=0, step=1, limit=10
    $region2: #{tpu_custom_call.1} parent=1 // loop_pre_header
      _
    $region3: #{tpu_custom_call.1} parent=1 // loop_header
      %s14 = sphi 0, %s18
      %p15 = scmp.ge.s32.totalorder %s14, 10
      %s24 = sphi 0, %s26
      %s27 = sphi 0, %s24
      %s28 = sphi 0, %s27
      %s44 = sphi 0, %s28
      %s48 = sphi 0, %s48
      %s50 = sphi 0, %s48
      %s51 = sphi 0, %s50
      %s65 = sphi 0, %s51
      %s71 = sphi 0, %s73
      %s74 = sphi 0, %s71
      %s75 = sphi 0, %s74
      %s91 = sphi 0, %s75
    $region4: #{tpu_custom_call.1} parent=1 // loop_header_branch
      %17 = sbr.rel (%p15) target = $region8
    $region5: #{tpu_custom_call.1} parent=1 // loop_body
      %s19 = ssub.s32 %s14, 1
      %s20 = ssub.s32 %s14, 2
      %s21 = sadd.s32 %s14, 1
      %s22 = ssub.s32 %s14, %s21
      %p23 = scmp.eq.s32.totalorder %s22, 0
      %s25 = sadd.s32 %s24, 1
      %s26 = scalar_select %p23, %s24, %s25
      %p29 = pneg %p23
      %p30 = scmp.eq.s32.totalorder %s14, 7
      %p31 = por %p29, %p30
      %p32 = scmp.ne.s32.totalorder %s24, %s27
      %p33 = scmp.eq.s32.totalorder %s14, 0
      %p34 = por %p32, %p33
      %p35 = scmp.ne.s32.totalorder %s24, %s27
      %p36 = scmp.eq.s32.totalorder %s19, 7
      %p37 = por %p35, %p36
      %p38 = scmp.ne.s32.totalorder %s27, %s28
      %p39 = scmp.eq.s32.totalorder %s19, 0
      %p40 = por %p38, %p39
      %p41 = scmp.ne.s32.totalorder %s27, %s28
      %p42 = scmp.eq.s32.totalorder %s20, 7
      %p43 = por %p41, %p42
      %p45 = scmp.ne.s32.totalorder %s28, %s44
      %p46 = scmp.eq.s32.totalorder %s20, 0
      %p47 = por %p45, %p46
      %s49 = sadd.s32 %s48, 1
      %p52 = scmp.eq.s32.totalorder %s14, 7
      %p53 = scmp.ne.s32.totalorder %s48, %s50
      %p54 = scmp.eq.s32.totalorder %s14, 0
      %p55 = por %p53, %p54
      %p56 = scmp.ne.s32.totalorder %s48, %s50
      %p57 = scmp.eq.s32.totalorder %s19, 7
      %p58 = por %p56, %p57
      %p59 = scmp.ne.s32.totalorder %s50, %s51
      %p60 = scmp.eq.s32.totalorder %s19, 0
      %p61 = por %p59, %p60
      %p62 = scmp.ne.s32.totalorder %s50, %s51
      %p63 = scmp.eq.s32.totalorder %s20, 7
      %p64 = por %p62, %p63
      %p66 = scmp.ne.s32.totalorder %s51, %s65
      %p67 = scmp.eq.s32.totalorder %s20, 0
      %p68 = por %p66, %p67
      %s69 = ssub.s32 %s14, %s21
      %p70 = scmp.eq.s32.totalorder %s69, 0
      %s72 = sadd.s32 %s71, 1
      %s73 = scalar_select %p70, %s71, %s72
      %p76 = pneg %p70
      %p77 = scmp.eq.s32.totalorder %s14, 7
      %p78 = por %p76, %p77
      %p79 = scmp.ne.s32.totalorder %s71, %s74
      %p80 = scmp.eq.s32.totalorder %s14, 0
      %p81 = por %p79, %p80
      %p82 = scmp.ne.s32.totalorder %s71, %s74
      %p83 = scmp.eq.s32.totalorder %s19, 7
      %p84 = por %p82, %p83
      %p85 = scmp.ne.s32.totalorder %s74, %s75
      %p86 = scmp.eq.s32.totalorder %s19, 0
      %p87 = por %p85, %p86
      %p88 = scmp.ne.s32.totalorder %s74, %s75
      %p89 = scmp.eq.s32.totalorder %s20, 7
      %p90 = por %p88, %p89
      %p92 = scmp.ne.s32.totalorder %s75, %s91
      %p93 = scmp.eq.s32.totalorder %s20, 0
      %p94 = por %p92, %p93
      %p95 = scmp.le.s32.totalorder 1, %s14
      %p96 = scmp.lt.s32.totalorder %s14, 9
      %p97 = pnand %p95, %p96
      %p98 = pneg %p97
      // Predicated region
      $region9: #{tpu_custom_call.1} parent=5 // pred_check
        _
      $region10: #{tpu_custom_call.1} parent=5 // pred_check_branch
        %100 = sbr.rel (%p97) target = $region12
      $region11: #{tpu_custom_call.1} parent=5 // pred_region
        %s101 = ssub.s32 %s14, 1
        // Predicated region
        $region13: #{tpu_custom_call.1} parent=11 // pred_check
          %p102 = pneg %p61
        $region14: #{tpu_custom_call.1} parent=11 // pred_check_branch
          %104 = sbr.rel (%p102) target = $region16
        $region15: #{tpu_custom_call.1} parent=11 // pred_region
          _
        $region16: #{tpu_custom_call.1} parent=11 // pred_fallthru
          _
      $region12: #{tpu_custom_call.1} parent=5 // pred_fallthru
        _
      %p105 = scmp.lt.s32.totalorder %s14, 8
      // Predicated region
      $region17: #{tpu_custom_call.1} parent=5 // pred_check
        %p106 = pneg %p105
      $region18: #{tpu_custom_call.1} parent=5 // pred_check_branch
        %108 = sbr.rel (%p106) target = $region20
      $region19: #{tpu_custom_call.1} parent=5 // pred_region
        // Predicated region
        $region21: #{tpu_custom_call.1} parent=19 // pred_check
          %p109 = pneg %p34
        $region22: #{tpu_custom_call.1} parent=19 // pred_check_branch
          %111 = sbr.rel (%p109) target = $region24
        $region23: #{tpu_custom_call.1} parent=19 // pred_region
          %s112 = sand.u32 %s24, 1
          %s113 = scalar_lea.sflag [#allocation3], %s112
          %s114 = sand.u32 %s24, 1
          %s115 = smul.addr %s114, 2
          %s116 = scalar_lea.vmem [#allocation2], %s115
          %s117 = smul.u32 2, %s14
          %s119 = ssub.s32 32, 32
          %120 = vsyncadd %s113, %s119
          %s121 = smul.addr %s117, 16
          %s122 = scalar_lea.hbm %s0, %s121
          %s124 = sshll.u32 %s116, 4
          %s125 = int_to_ptr.vmem [resolvable:$true] %s124
          %127 = dma.hbm_to_vmem [thread:$0]  %s122, 32, %s125, %s113
        $region24: #{tpu_custom_call.1} parent=19 // pred_fallthru
          _
      $region20: #{tpu_custom_call.1} parent=5 // pred_fallthru
        _
      %p128 = scmp.le.s32.totalorder 1, %s14
      %p129 = scmp.lt.s32.totalorder %s14, 9
      %p130 = pnand %p128, %p129
      %p131 = pneg %p130
      // Predicated region
      $region25: #{tpu_custom_call.1} parent=5 // pred_check
        _
      $region26: #{tpu_custom_call.1} parent=5 // pred_check_branch
        %133 = sbr.rel (%p130) target = $region28
      $region27: #{tpu_custom_call.1} parent=5 // pred_region
        %s134 = ssub.s32 %s14, 1
        %s135 = sand.u32 %s27, 1
        %s136 = scalar_lea.sflag [#allocation3], %s135
        %s137 = sand.u32 %s27, 1
        %s138 = smul.addr %s137, 2
        %s139 = scalar_lea.vmem [#allocation2], %s138
        // Predicated region
        $region29: #{tpu_custom_call.1} parent=27 // pred_check
          %p140 = pneg %p40
        $region30: #{tpu_custom_call.1} parent=27 // pred_check_branch
          %142 = sbr.rel (%p140) target = $region32
        $region31: #{tpu_custom_call.1} parent=27 // pred_region
          %143 = dma.done %s136, 32
        $region32: #{tpu_custom_call.1} parent=27 // pred_fallthru
          _
        %s144 = sand.u32 %s27, 1
        %s145 = scalar_lea.sflag [#allocation3], %s144
        %s146 = sand.u32 %s27, 1
        %s147 = smul.addr %s146, 2
        %s148 = scalar_lea.vmem [#allocation2], %s147
        %p149 = pneg %p40
        %p150 = pneg %p37
        %p151 = pneg %p61
        %p152 = pneg %p58
        %p153 = pneg %p87
        %p154 = pneg %p84
        %s155 = sand.u32 %s74, 1
        %s156 = scalar_lea.sflag [#allocation4], %s155
        %s157 = sand.u32 %s74, 1
        %s158 = smul.addr %s157, 16
        %s159 = scalar_lea.vmem [#allocation5], %s158
        %s160 = smul.u32 2, %s19
        %s161 = smul.u32 2, %s19
        %v162 = vld [vmem:[%s139] sm:$0x3]
        %v163 = vld [vmem:[%s1] sm:$0xff]
        %v164 = vrcp.pop %v162
        %v165 = vmul.f32 0.2, %v164
        %v166 = vmul.f32 %v162, 0.1
        %v168 = vlaneseq
        %v169 = vshrl.u32 %v168, 7
        %v170 = vsub.s32 0, %v169
        %v171 = vrot.slane %v166, %v170
        %v172 = vlaneseq
        %v173 = vshrl.u32 %v172, 7
        %v174 = vsub.s32 1, %v173
        %v175 = vrot.slane %v166, %v174
        %179 = vset.pattern.permute.xlu0 0
        %180 = vperm.xlu0 %179, %v163
        %v181 = vpop.permute.xlu0 %180
        %v183 = vmul.f32 %v171, %v181
        %v184 = vmul.f32 %v175, %v181
        %v185 = vand.u32 2147483647, %v183
        %vm186 = vcmp.le.f32.partialorder %v185, 0.7853982
        %vm187 = vcmp.lt.s32.totalorder %v183, 0
        %v188 = vand.u32 %v183, 2139095040
        %v189 = vshrl.u32 %v188, 23
        %v190 = vsub.s32 %v189, 127
        %v191 = vand.u32 2147483647, %v183
        %v192 = vand.u32 %v191, 8388607
        %v193 = vor.u32 %v192, 8388608
        %v194 = vsub.s32 0, %v193
        %v195 = vadd.s32 %v190, 1
        %vm196 = vcmp.gt.s32.totalorder %v195, 0
        %v197 = vsel %vm196, %v195, 0
        %v198 = vshrl.u32 %v197, 5
        %v199 = vand.u32 %v197, 31
        %v200 = vsub.s32 32, %v199
        %v201 = vshrl.u32 683565275, %v200
        %v202 = vshll.u32 683565275, %v199
        %v203 = vshrl.u32 2475754826, %v200
        %v204 = vor.u32 %v202, %v203
        %v205 = vshll.u32 2475754826, %v199
        %v206 = vshrl.u32 2131351028, %v200
        %v207 = vor.u32 %v205, %v206
        %v208 = vshll.u32 2131351028, %v199
        %v209 = vshrl.u32 2102212464, %v200
        %v210 = vor.u32 %v208, %v209
        %v211 = vshll.u32 2102212464, %v199
        %v212 = vshrl.u32 920167782, %v200
        %v213 = vor.u32 %v211, %v212
        %v214 = vshll.u32 920167782, %v199
        %v215 = vshrl.u32 1326507024, %v200
        %v216 = vor.u32 %v214, %v215
        %vm217 = vcmp.lt.s32.totalorder %v198, 1
        %vm218 = vcmp.lt.s32.totalorder %v198, 2
        %vm219 = vcmp.lt.s32.totalorder %v198, 3
        %vm220 = vcmp.lt.s32.totalorder %v198, 4
        %v221 = vsel %vm217, %v201, %v204
        %v222 = vsel %vm220, %v210, 2102212464
        %v223 = vsel %vm219, %v207, %v222
        %v224 = vsel %vm218, %v221, %v223
        %v225 = vsel %vm217, %v204, %v207
        %v226 = vsel %vm220, %v213, 920167782
        %v227 = vsel %vm219, %v210, %v226
        %v228 = vsel %vm218, %v225, %v227
        %v229 = vsel %vm217, %v207, %v210
        %v230 = vsel %vm220, %v216, 1326507024
        %v231 = vsel %vm219, %v213, %v230
        %v232 = vsel %vm218, %v229, %v231
        %v233 = vshll.u32 %v193, 8
        %v234 = vmul.u32.u64.compose %v233, %v232
        %v235 = vextract.low.u32 %v234
        %v236 = vextract.high.u32 %v234
        %v237 = vmul.u32.u64.compose %v233, %v228
        %v238 = vextract.low.u32 %v237
        %v239 = vextract.high.u32 %v237
        %v240 = vmul.u32 %v233, %v224
        %v241 = vadd.s32 %v236, %v238
        %vm242 = vc.u32 %v236, %v238
        %v243 = vadd.s32 %v239, 1
        %v244 = vsel %vm242, %v243, %v239
        %v245 = vadd.s32 %v240, %v244
        %v246 = vadd.s32 %v245, 536870912
        %v247 = vshrl.u32 %v246, 30
        %v248 = vshll.u32 %v247, 30
        %v249 = vsub.s32 %v245, %v248
        %vm250 = vcmp.lt.s32.totalorder %v249, 0
        %v251 = vsub.s32 0, %v249
        %v252 = vsel %vm250, %v251, %v249
        %v253 = vclz %v252
        %v254 = vsub.s32 %v253, 2
        %vm255 = vcmp.gt.s32.totalorder 0, %v254
        %v256 = vsel %vm255, 0, %v254
        %v257 = vsub.s32 32, %v256
        %v258 = vshll.u32 %v249, %v256
        %v259 = vshrl.u32 %v241, %v257
        %v260 = vor.u32 %v258, %v259
        %v261 = vsub.s32 4294967266, %v256
        %v262 = vadd.s32 %v261, 127
        %v263 = vshll.u32 %v262, 23
        %v264 = vor.u32 4788187, %v263
        %v265 = vand.u32 2147483647, %v264
        %v267 = vcvt.s32.f32 %v260
        %v268 = vmul.f32 %v267, %v265
        %v269 = vxor.u32 %v268, 2147483648
        %v270 = vsel %vm187, %v269, %v268
        %v271 = vsub.s32 4, %v247
        %v272 = vsel %vm187, %v271, %v247
        %v273 = vsel %vm186, %v183, %v270
        %v274 = vsel %vm186, 0, %v272
        %v275 = vcosq.f32.pop %v273
        %v276 = vsinq.f32.pop %v273
        %vm277 = vweird.f32 %v183
        %v278 = vadd.s32 %v274, 3
        %v279 = vand.u32 %v278, 3
        %vm280 = vcmp.lt.s32.totalorder %v279, 2
        %vm281 = vcmp.eq.s32.totalorder %v279, 0
        %v282 = vxor.u32 %v276, 2147483648
        %v283 = vsel %vm281, %v275, %v282
        %vm284 = vcmp.eq.s32.totalorder %v279, 2
        %v285 = vxor.u32 %v275, 2147483648
        %v286 = vsel %vm284, %v285, %v276
        %v287 = vsel %vm280, %v283, %v286
        %v288 = vsel %vm277, nan, %v287
        %v289 = vand.u32 2147483647, %v184
        %vm290 = vcmp.le.f32.partialorder %v289, 0.7853982
        %vm291 = vcmp.lt.s32.totalorder %v184, 0
        %v292 = vand.u32 %v184, 2139095040
        %v293 = vshrl.u32 %v292, 23
        %v294 = vsub.s32 %v293, 127
        %v295 = vand.u32 2147483647, %v184
        %v296 = vand.u32 %v295, 8388607
        %v297 = vor.u32 %v296, 8388608
        %v298 = vsub.s32 0, %v297
        %v299 = vadd.s32 %v294, 1
        %vm300 = vcmp.gt.s32.totalorder %v299, 0
        %v301 = vsel %vm300, %v299, 0
        %v302 = vshrl.u32 %v301, 5
        %v303 = vand.u32 %v301, 31
        %v304 = vsub.s32 32, %v303
        %v305 = vshrl.u32 683565275, %v304
        %v306 = vshll.u32 683565275, %v303
        %v307 = vshrl.u32 2475754826, %v304
        %v308 = vor.u32 %v306, %v307
        %v309 = vshll.u32 2475754826, %v303
        %v310 = vshrl.u32 2131351028, %v304
        %v311 = vor.u32 %v309, %v310
        %v312 = vshll.u32 2131351028, %v303
        %v313 = vshrl.u32 2102212464, %v304
        %v314 = vor.u32 %v312, %v313
        %v315 = vshll.u32 2102212464, %v303
        %v316 = vshrl.u32 920167782, %v304
        %v317 = vor.u32 %v315, %v316
        %v318 = vshll.u32 920167782, %v303
        %v319 = vshrl.u32 1326507024, %v304
        %v320 = vor.u32 %v318, %v319
        %vm321 = vcmp.lt.s32.totalorder %v302, 1
        %vm322 = vcmp.lt.s32.totalorder %v302, 2
        %vm323 = vcmp.lt.s32.totalorder %v302, 3
        %vm324 = vcmp.lt.s32.totalorder %v302, 4
        %v325 = vsel %vm321, %v305, %v308
        %v326 = vsel %vm324, %v314, 2102212464
        %v327 = vsel %vm323, %v311, %v326
        %v328 = vsel %vm322, %v325, %v327
        %v329 = vsel %vm321, %v308, %v311
        %v330 = vsel %vm324, %v317, 920167782
        %v331 = vsel %vm323, %v314, %v330
        %v332 = vsel %vm322, %v329, %v331
        %v333 = vsel %vm321, %v311, %v314
        %v334 = vsel %vm324, %v320, 1326507024
        %v335 = vsel %vm323, %v317, %v334
        %v336 = vsel %vm322, %v333, %v335
        %v337 = vshll.u32 %v297, 8
        %v338 = vmul.u32.u64.compose %v337, %v336
        %v339 = vextract.low.u32 %v338
        %v340 = vextract.high.u32 %v338
        %v341 = vmul.u32.u64.compose %v337, %v332
        %v342 = vextract.low.u32 %v341
        %v343 = vextract.high.u32 %v341
        %v344 = vmul.u32 %v337, %v328
        %v345 = vadd.s32 %v340, %v342
        %vm346 = vc.u32 %v340, %v342
        %v347 = vadd.s32 %v343, 1
        %v348 = vsel %vm346, %v347, %v343
        %v349 = vadd.s32 %v344, %v348
        %v350 = vadd.s32 %v349, 536870912
        %v351 = vshrl.u32 %v350, 30
        %v352 = vshll.u32 %v351, 30
        %v353 = vsub.s32 %v349, %v352
        %vm354 = vcmp.lt.s32.totalorder %v353, 0
        %v355 = vsub.s32 0, %v353
        %v356 = vsel %vm354, %v355, %v353
        %v357 = vclz %v356
        %v358 = vsub.s32 %v357, 2
        %vm359 = vcmp.gt.s32.totalorder 0, %v358
        %v360 = vsel %vm359, 0, %v358
        %v361 = vsub.s32 32, %v360
        %v362 = vshll.u32 %v353, %v360
        %v363 = vshrl.u32 %v345, %v361
        %v364 = vor.u32 %v362, %v363
        %v365 = vsub.s32 4294967266, %v360
        %v366 = vadd.s32 %v365, 127
        %v367 = vshll.u32 %v366, 23
        %v368 = vor.u32 4788187, %v367
        %v369 = vand.u32 2147483647, %v368
        %v371 = vcvt.s32.f32 %v364
        %v372 = vmul.f32 %v371, %v369
        %v373 = vxor.u32 %v372, 2147483648
        %v374 = vsel %vm291, %v373, %v372
        %v375 = vsub.s32 4, %v351
        %v376 = vsel %vm291, %v375, %v351
        %v377 = vsel %vm290, %v184, %v374
        %v378 = vsel %vm290, 0, %v376
        %v379 = vcosq.f32.pop %v377
        %v380 = vsinq.f32.pop %v377
        %vm381 = vweird.f32 %v184
        %v382 = vadd.s32 %v378, 3
        %v383 = vand.u32 %v382, 3
        %vm384 = vcmp.lt.s32.totalorder %v383, 2
        %vm385 = vcmp.eq.s32.totalorder %v383, 0
        %v386 = vxor.u32 %v380, 2147483648
        %v387 = vsel %vm385, %v379, %v386
        %vm388 = vcmp.eq.s32.totalorder %v383, 2
        %v389 = vxor.u32 %v379, 2147483648
        %v390 = vsel %vm388, %v389, %v380
        %v391 = vsel %vm384, %v387, %v390
        %v392 = vsel %vm381, nan, %v391
        %v394 = vlaneseq
        %v395 = vshrl.u32 %v394, 7
        %v396 = vsub.s32 0, %v395
        %v397 = vrot.slane %v165, %v396
        %v398 = vlaneseq
        %v399 = vshrl.u32 %v398, 7
        %v400 = vsub.s32 1, %v399
        %v401 = vrot.slane %v165, %v400
        %v404 = vmul.f32 %v288, %v397
        %v405 = vmul.f32 %v392, %v401
        %406 = vst [vmem:[%s159] sm:$0xff] %v404
        %407 = vst [vmem:[%s159 + $0x8] sm:$0xff] %v405
        %s408 = sand.u32 %s74, 1
        %s409 = scalar_lea.sflag [#allocation4], %s408
        %s410 = sand.u32 %s74, 1
        %s411 = smul.addr %s410, 16
        %s412 = scalar_lea.vmem [#allocation5], %s411
        // Predicated region
        $region33: #{tpu_custom_call.1} parent=27 // pred_check
          %p413 = pneg %p84
        $region34: #{tpu_custom_call.1} parent=27 // pred_check_branch
          %415 = sbr.rel (%p413) target = $region36
        $region35: #{tpu_custom_call.1} parent=27 // pred_region
          %s416 = smul.u32 2, %s19
          %s418 = ssub.s32 256, 256
          %419 = vsyncadd %s409, %s418
          %s420 = smul.addr %s416, 128
          %s421 = scalar_lea.hbm %s2, %s420
          %s423 = sshll.u32 %s412, 4
          %s424 = int_to_ptr.vmem [resolvable:$true] %s423
          %426 = dma.vmem_to_hbm [thread:$0]  %s424, 256, %s421, %s409
        $region36: #{tpu_custom_call.1} parent=27 // pred_fallthru
          _
      $region28: #{tpu_custom_call.1} parent=5 // pred_fallthru
        _
      %p427 = scmp.le.s32.totalorder 2, %s14
      // Predicated region
      $region37: #{tpu_custom_call.1} parent=5 // pred_check
        %p428 = pneg %p427
      $region38: #{tpu_custom_call.1} parent=5 // pred_check_branch
        %430 = sbr.rel (%p428) target = $region40
      $region39: #{tpu_custom_call.1} parent=5 // pred_region
        %s431 = ssub.s32 %s14, 2
        // Predicated region
        $region41: #{tpu_custom_call.1} parent=39 // pred_check
          %p432 = pneg %p90
        $region42: #{tpu_custom_call.1} parent=39 // pred_check_branch
          %434 = sbr.rel (%p432) target = $region44
        $region43: #{tpu_custom_call.1} parent=39 // pred_region
          %s435 = sand.u32 %s75, 1
          %s436 = scalar_lea.sflag [#allocation4], %s435
          %s437 = sand.u32 %s75, 1
          %s438 = smul.addr %s437, 16
          %s439 = scalar_lea.vmem [#allocation5], %s438
          %440 = dma.done %s436, 256
        $region44: #{tpu_custom_call.1} parent=39 // pred_fallthru
          _
      $region40: #{tpu_custom_call.1} parent=5 // pred_fallthru
        _
    $region6: #{tpu_custom_call.1} parent=1 // loop_footer
      %s18 = sadd.s32 1, %s14
    $region7: #{tpu_custom_call.1} parent=1 // loop_footer_branch
      %13 = sbr.rel target = $region3
    $region8: #{tpu_custom_call.1} parent=1 // loop_exit
      _
    %441 = vsyncpa [#allocation3], 1
    %s442 = scalar_lea.sflag [#allocation3], 1
    %443 = vsyncpa %s442, 1
    %444 = vsyncpa [#allocation4], 1
    %s445 = scalar_lea.sflag [#allocation4], 1
    %446 = vsyncpa %s445, 1

</llo_original>
